<compile_context>
chip_gen: v7x
topology: tpu7x:2x2x1
jax: 0.10.0
libtpu: 0.0.40
codegen_flags: <defaults>
</compile_context>

<pallas_src>
import jax
import jax.numpy as jnp
import numpy as np
from jax.experimental import pallas as pl
from jax.experimental.pallas import tpu as pltpu

STATE_DIM = 16
ACTION_DIM = 4
HIDDEN_DIM = 64
BATCH = 16
LOG_STD_INIT = -1.0

W_ROWS = STATE_DIM + 3 * HIDDEN_DIM          # 208 rows: w1 | w2 | w3 | w4 (padded)
B_ROWS = 8                                   # b1, b2, b3, b4-pad, log_std-pad, 3x zero
IN_LANES = 32                                # packed input: state | eps | zero pad
OUT_LANES = 128                              # lane-dense packed output
N_OUT_VALS = 3 * ACTION_DIM + 1              # sample | mean | std | logp_sum
MAX_TILE_B = 4096                            # fat tiles amortize ~0.35us/step overhead

_LOG_2PI = float(np.log(2.0 * np.pi))


def _stable_softplus(x):
    # log(1 + exp(x)) without overflow for large x.
    return jnp.maximum(x, 0.0) + jnp.log1p(jnp.exp(-jnp.abs(x)))


def actor_kernel(x_ref, w_ref, b_ref, out_ref):
    # Packed input: lanes 0:STATE_DIM are the state, next ACTION_DIM lanes are eps.
    x = x_ref[:, 0:STATE_DIM]                                     # [tb, STATE_DIM]
    eps = x_ref[:, STATE_DIM:STATE_DIM + ACTION_DIM]              # [tb, ACTION_DIM]

    # layer1..layer3: x @ W + b, ReLU  (weights sliced statically from the packed slab)
    h = jnp.dot(x, w_ref[0:STATE_DIM, :],
                preferred_element_type=jnp.float32) + b_ref[0:1, :]
    h = jnp.maximum(h, 0.0)
    h = jnp.dot(h, w_ref[STATE_DIM:STATE_DIM + HIDDEN_DIM, :],
                preferred_element_type=jnp.float32) + b_ref[1:2, :]
    h = jnp.maximum(h, 0.0)
    h = jnp.dot(h, w_ref[STATE_DIM + HIDDEN_DIM:STATE_DIM + 2 * HIDDEN_DIM, :],
                preferred_element_type=jnp.float32) + b_ref[2:3, :]
    h = jnp.maximum(h, 0.0)

    # layer4 uses the zero-padded [HIDDEN, HIDDEN] block; lanes >= ACTION_DIM stay 0.
    mean_p = jnp.dot(h, w_ref[STATE_DIM + 2 * HIDDEN_DIM:W_ROWS, :],
                     preferred_element_type=jnp.float32) + b_ref[3:4, :]
    mean = mean_p[:, 0:ACTION_DIM]                                # [tb, ACTION_DIM]

    # std = clamp(softplus(log_std), -1, 1)  (batch-independent, [1, ACTION_DIM])
    ls_row = b_ref[4:5, :]
    log_std = ls_row[:, 0:ACTION_DIM]
    std = jnp.clip(_stable_softplus(log_std), -1.0, 1.0)

    # reparameterized-style sample: mean + std * eps, eps ~ N(0, 1)
    sample = mean + std * eps

    # Normal log-prob summed over the action axis; (sample - mean)/std == eps.
    logp = -0.5 * (eps * eps) - jnp.log(std) - 0.5 * _LOG_2PI
    logp_sum = jnp.sum(logp, axis=-1, keepdims=True)              # [tb, 1]

    tb = sample.shape[0]
    std_b = jnp.broadcast_to(std, (tb, ACTION_DIM))
    tail = jnp.zeros((tb, OUT_LANES - N_OUT_VALS), jnp.float32)

    # Assemble the full 128-lane slab in vregs and store it exactly once
    # (single unmasked lane-dense vst; no partial/masked stores).
    out_ref[...] = jnp.concatenate([sample, mean, std_b, logp_sum, tail], axis=-1)


def pack_params(params):
    """Pack the 9 parameter tensors into 2 operands.

    Call ONCE at init / after each optimizer step — NOT inside the rollout loop.
    """
    w1, b1, w2, b2, w3, b3, w4, b4, log_std = params
    f32 = jnp.float32
    w4_pad = jnp.zeros((HIDDEN_DIM, HIDDEN_DIM), f32).at[:, :ACTION_DIM].set(w4)
    w_slab = jnp.concatenate([w1, w2, w3, w4_pad], axis=0)        # [208, 64]

    def pad_row(v):
        return jnp.zeros((1, HIDDEN_DIM), f32).at[:, :v.shape[1]].set(v)

    b_slab = jnp.concatenate(
        [b1, b2, b3, pad_row(b4), pad_row(log_std),
         jnp.zeros((B_ROWS - 5, HIDDEN_DIM), f32)], axis=0)       # [8, 64]
    return w_slab, b_slab


def continuous_actor_forward(state, packed_params, eps, *, max_tile_b=MAX_TILE_B):
    """state: [B, STATE_DIM] f32; eps: [B, ACTION_DIM] f32 standard normal.

    packed_params = pack_params(params)  (pre-packed, reused across calls).
    Returns (sample, log_prob, mean, std).
    """
    w_slab, b_slab = packed_params
    B = state.shape[0]

    # One lane-packed input operand: state | eps | zero-pad  -> single DMA stream.
    pad_lanes = IN_LANES - (STATE_DIM + ACTION_DIM)
    x_in = jnp.concatenate(
        [state.astype(jnp.float32), eps.astype(jnp.float32),
         jnp.zeros((B, pad_lanes), jnp.float32)], axis=1)

    # Tile selection: whole batch in one tile when it fits (block == full dims,
    # so any B is legal); otherwise fixed max_tile_b-row tiles with zero padding.
    if B <= max_tile_b:
        tile_b, b_pad = B, B
    else:
        tile_b = max_tile_b
        b_pad = ((B + tile_b - 1) // tile_b) * tile_b
    if b_pad != B:
        x_in = jnp.concatenate(
            [x_in, jnp.zeros((b_pad - B, IN_LANES), jnp.float32)], axis=0)
    n_steps = b_pad // tile_b

    # Shard independent batch tiles across the 2 TensorCores (v7x) whenever
    # there is more than one tile; harmless on single-TC v5e/v6e.
    semantics = ("parallel",) if n_steps >= 2 else ("arbitrary",)

    packed = pl.pallas_call(
        actor_kernel,
        out_shape=jax.ShapeDtypeStruct((b_pad, OUT_LANES), jnp.float32),
        grid_spec=pltpu.PrefetchScalarGridSpec(
            num_scalar_prefetch=0,
            grid=(n_steps,),
            in_specs=[
                pl.BlockSpec((tile_b, IN_LANES), lambda i: (i, 0)),    # state|eps
                pl.BlockSpec((W_ROWS, HIDDEN_DIM), lambda i: (0, 0)),  # packed weights
                pl.BlockSpec((B_ROWS, HIDDEN_DIM), lambda i: (0, 0)),  # packed biases+log_std
            ],
            out_specs=pl.BlockSpec((tile_b, OUT_LANES), lambda i: (i, 0)),
        ),
        compiler_params=pltpu.CompilerParams(dimension_semantics=semantics),
    )(x_in, w_slab, b_slab)

    packed = packed[:B]
    sample = packed[:, 0:ACTION_DIM]
    mean = packed[:, ACTION_DIM:2 * ACTION_DIM]
    std = packed[:, 2 * ACTION_DIM:3 * ACTION_DIM]
    logprob = packed[:, 3 * ACTION_DIM]
    return sample, logprob, mean, std


def init_params(key):
    """Deterministic init mimicking nn.Linear default (uniform +-1/sqrt(fan_in))."""
    def linear(key, fan_in, fan_out):
        kw, kb = jax.random.split(key)
        bound = 1.0 / np.sqrt(fan_in)
        w = jax.random.uniform(kw, (fan_in, fan_out), jnp.float32, -bound, bound)
        b = jax.random.uniform(kb, (1, fan_out), jnp.float32, -bound, bound)
        return w, b

    k1, k2, k3, k4 = jax.random.split(key, 4)
    w1, b1 = linear(k1, STATE_DIM, HIDDEN_DIM)
    w2, b2 = linear(k2, HIDDEN_DIM, HIDDEN_DIM)
    w3, b3 = linear(k3, HIDDEN_DIM, HIDDEN_DIM)
    w4, b4 = linear(k4, HIDDEN_DIM, ACTION_DIM)
    log_std = jnp.full((1, ACTION_DIM), LOG_STD_INIT, jnp.float32)
    return (w1, b1, w2, b2, w3, b3, w4, b4, log_std)


def reference_forward(state, params, eps):
    """Pure-JAX mirror of the PyTorch forward (logp uses the (x - mean) form)."""
    w1, b1, w2, b2, w3, b3, w4, b4, log_std = params
    h = jnp.maximum(state @ w1 + b1, 0.0)
    h = jnp.maximum(h @ w2 + b2, 0.0)
    h = jnp.maximum(h @ w3 + b3, 0.0)
    mean = h @ w4 + b4
    std = jnp.clip(_stable_softplus(log_std), -1.0, 1.0)
    sample = mean + std * eps
    logp = (-((sample - mean) ** 2) / (2.0 * std * std)
            - jnp.log(std) - 0.5 * _LOG_2PI)
    return sample, jnp.sum(logp, axis=-1), mean, jnp.broadcast_to(std, mean.shape)


if __name__ == "__main__":
    key = jax.random.PRNGKey(0)
    kp, ks, ke = jax.random.split(key, 3)

    params = init_params(kp)
    packed_params = pack_params(params)   # hoisted: pack once, reuse per forward
    state = jax.random.normal(ks, (BATCH, STATE_DIM), jnp.float32)
    eps = jax.random.normal(ke, (BATCH, ACTION_DIM), jnp.float32)

    sample, logprob, mean, std = jax.block_until_ready(
        continuous_actor_forward(state, packed_params, eps))

    ref_sample, ref_logprob, ref_mean, ref_std = reference_forward(state, params, eps)

    np.testing.assert_allclose(np.asarray(sample), np.asarray(ref_sample),
                               rtol=1e-5, atol=1e-5)
    np.testing.assert_allclose(np.asarray(mean), np.asarray(ref_mean),
                               rtol=1e-5, atol=1e-5)
    np.testing.assert_allclose(np.asarray(std), np.asarray(ref_std),
                               rtol=1e-5, atol=1e-5)
    # kernel uses the eps-form log-prob (no cancellation); allow tiny fp slack.
    np.testing.assert_allclose(np.asarray(logprob), np.asarray(ref_logprob),
                               rtol=1e-5, atol=1e-4)

    assert sample.shape == (BATCH, ACTION_DIM)
    assert logprob.shape == (BATCH,)
    print("KERNEL_OK")
</pallas_src>

<mosaic_0001>
module attributes {stable_mosaic.version = 11 : i64} {
  func.func @actor_kernel(%arg0: i32, %arg1: memref<16x32xf32, #tpu.memory_space<vmem>>, %arg2: memref<208x64xf32, #tpu.memory_space<vmem>>, %arg3: memref<8x64xf32, #tpu.memory_space<vmem>>, %arg4: memref<16x128xf32, #tpu.memory_space<vmem>>) attributes {dimension_semantics = [#tpu.dimension_semantics<arbitrary>], iteration_bounds = array<i64: 1>, scalar_prefetch = 0 : i64, scratch_operands = 0 : i64, tpu.core_type = #tpu.core_type<tc>, window_params = [{transform_indices = @transform_0, window_bounds = array<i64: 16, 32>}, {pipeline_mode = #tpu.pipeline_mode<synchronous>, transform_indices = @transform_1, window_bounds = array<i64: 208, 64>}, {pipeline_mode = #tpu.pipeline_mode<synchronous>, transform_indices = @transform_2, window_bounds = array<i64: 8, 64>}, {transform_indices = @transform_3, window_bounds = array<i64: 16, 128>}]} {
    %c0 = arith.constant 0 : index
    %c0_0 = arith.constant 0 : index
    %0 = vector.load %arg1[%c0, %c0_0] : memref<16x32xf32, #tpu.memory_space<vmem>>, vector<16x16xf32>
    %c0_1 = arith.constant 0 : index
    %c16 = arith.constant 16 : index
    %1 = vector.load %arg1[%c0_1, %c16] : memref<16x32xf32, #tpu.memory_space<vmem>>, vector<16x4xf32>
    %c0_2 = arith.constant 0 : index
    %c0_3 = arith.constant 0 : index
    %2 = vector.load %arg2[%c0_2, %c0_3] : memref<208x64xf32, #tpu.memory_space<vmem>>, vector<16x64xf32>
    %cst = arith.constant dense<0.000000e+00> : vector<16x64xf32>
    %3 = tpu.matmul %0, %2, %cst {dimension_numbers = #tpu.dot_dimension_numbers<[1], [0], [0], [1], [0, 0, 1, 1], [], []>} : vector<16x16xf32>, vector<16x64xf32>, vector<16x64xf32> -> vector<16x64xf32>
    %c0_4 = arith.constant 0 : index
    %c0_5 = arith.constant 0 : index
    %4 = vector.load %arg3[%c0_4, %c0_5] : memref<8x64xf32, #tpu.memory_space<vmem>>, vector<1x64xf32>
    %5 = vector.broadcast %4 : vector<1x64xf32> to vector<16x64xf32>
    %6 = arith.addf %3, %5 : vector<16x64xf32>
    %cst_6 = arith.constant 0.000000e+00 : f32
    %7 = vector.broadcast %cst_6 : f32 to vector<16x64xf32>
    %8 = arith.maximumf %6, %7 : vector<16x64xf32>
    %c16_7 = arith.constant 16 : index
    %c0_8 = arith.constant 0 : index
    %9 = vector.load %arg2[%c16_7, %c0_8] : memref<208x64xf32, #tpu.memory_space<vmem>>, vector<64x64xf32>
    %cst_9 = arith.constant dense<0.000000e+00> : vector<16x64xf32>
    %10 = tpu.matmul %8, %9, %cst_9 {dimension_numbers = #tpu.dot_dimension_numbers<[1], [0], [0], [1], [0, 0, 1, 1], [], []>} : vector<16x64xf32>, vector<64x64xf32>, vector<16x64xf32> -> vector<16x64xf32>
    %c1 = arith.constant 1 : index
    %c0_10 = arith.constant 0 : index
    %11 = vector.load %arg3[%c1, %c0_10] : memref<8x64xf32, #tpu.memory_space<vmem>>, vector<1x64xf32>
    %12 = vector.broadcast %11 : vector<1x64xf32> to vector<16x64xf32>
    %13 = arith.addf %10, %12 : vector<16x64xf32>
    %cst_11 = arith.constant 0.000000e+00 : f32
    %14 = vector.broadcast %cst_11 : f32 to vector<16x64xf32>
    %15 = arith.maximumf %13, %14 : vector<16x64xf32>
    %c80 = arith.constant 80 : index
    %c0_12 = arith.constant 0 : index
    %16 = vector.load %arg2[%c80, %c0_12] : memref<208x64xf32, #tpu.memory_space<vmem>>, vector<64x64xf32>
    %cst_13 = arith.constant dense<0.000000e+00> : vector<16x64xf32>
    %17 = tpu.matmul %15, %16, %cst_13 {dimension_numbers = #tpu.dot_dimension_numbers<[1], [0], [0], [1], [0, 0, 1, 1], [], []>} : vector<16x64xf32>, vector<64x64xf32>, vector<16x64xf32> -> vector<16x64xf32>
    %c2 = arith.constant 2 : index
    %c0_14 = arith.constant 0 : index
    %18 = vector.load %arg3[%c2, %c0_14] : memref<8x64xf32, #tpu.memory_space<vmem>>, vector<1x64xf32>
    %19 = vector.broadcast %18 : vector<1x64xf32> to vector<16x64xf32>
    %20 = arith.addf %17, %19 : vector<16x64xf32>
    %cst_15 = arith.constant 0.000000e+00 : f32
    %21 = vector.broadcast %cst_15 : f32 to vector<16x64xf32>
    %22 = arith.maximumf %20, %21 : vector<16x64xf32>
    %c144 = arith.constant 144 : index
    %c0_16 = arith.constant 0 : index
    %23 = vector.load %arg2[%c144, %c0_16] : memref<208x64xf32, #tpu.memory_space<vmem>>, vector<64x64xf32>
    %cst_17 = arith.constant dense<0.000000e+00> : vector<16x64xf32>
    %24 = tpu.matmul %22, %23, %cst_17 {dimension_numbers = #tpu.dot_dimension_numbers<[1], [0], [0], [1], [0, 0, 1, 1], [], []>} : vector<16x64xf32>, vector<64x64xf32>, vector<16x64xf32> -> vector<16x64xf32>
    %c3 = arith.constant 3 : index
    %c0_18 = arith.constant 0 : index
    %25 = vector.load %arg3[%c3, %c0_18] : memref<8x64xf32, #tpu.memory_space<vmem>>, vector<1x64xf32>
    %26 = vector.broadcast %25 : vector<1x64xf32> to vector<16x64xf32>
    %27 = arith.addf %24, %26 : vector<16x64xf32>
    %28 = vector.extract_strided_slice %27 {offsets = [0, 0], sizes = [16, 4], strides = [1, 1]} : vector<16x64xf32> to vector<16x4xf32>
    %c4 = arith.constant 4 : index
    %c0_19 = arith.constant 0 : index
    %29 = vector.load %arg3[%c4, %c0_19] : memref<8x64xf32, #tpu.memory_space<vmem>>, vector<1x64xf32>
    %30 = vector.extract_strided_slice %29 {offsets = [0, 0], sizes = [1, 4], strides = [1, 1]} : vector<1x64xf32> to vector<1x4xf32>
    %cst_20 = arith.constant 0.000000e+00 : f32
    %31 = vector.broadcast %cst_20 : f32 to vector<1x4xf32>
    %32 = arith.maximumf %30, %31 : vector<1x4xf32>
    %33 = math.absf %30 : vector<1x4xf32>
    %cst_21 = arith.constant 0.000000e+00 : f32
    %34 = vector.broadcast %cst_21 : f32 to vector<1x4xf32>
    %35 = arith.subf %34, %33 : vector<1x4xf32>
    %36 = math.exp %35 : vector<1x4xf32>
    %37 = math.log1p %36 : vector<1x4xf32>
    %38 = arith.addf %32, %37 : vector<1x4xf32>
    %cst_22 = arith.constant -1.000000e+00 : f32
    %cst_23 = arith.constant 1.000000e+00 : f32
    %39 = vector.broadcast %cst_22 : f32 to vector<1x4xf32>
    %40 = arith.maximumf %39, %38 : vector<1x4xf32>
    %41 = vector.broadcast %cst_23 : f32 to vector<1x4xf32>
    %42 = arith.minimumf %41, %40 : vector<1x4xf32>
    %43 = vector.broadcast %42 : vector<1x4xf32> to vector<16x4xf32>
    %44 = arith.mulf %43, %1 : vector<16x4xf32>
    %45 = arith.addf %28, %44 : vector<16x4xf32>
    %46 = arith.mulf %1, %1 : vector<16x4xf32>
    %cst_24 = arith.constant -5.000000e-01 : f32
    %47 = vector.broadcast %cst_24 : f32 to vector<16x4xf32>
    %48 = arith.mulf %47, %46 : vector<16x4xf32>
    %49 = math.log %42 : vector<1x4xf32>
    %50 = vector.broadcast %49 : vector<1x4xf32> to vector<16x4xf32>
    %51 = arith.subf %48, %50 : vector<16x4xf32>
    %cst_25 = arith.constant 0.918938517 : f32
    %52 = vector.broadcast %cst_25 : f32 to vector<16x4xf32>
    %53 = arith.subf %51, %52 : vector<16x4xf32>
    %cst_26 = arith.constant dense<0.000000e+00> : vector<16xf32>
    %54 = vector.multi_reduction <add>, %53, %cst_26 [1] : vector<16x4xf32> to vector<16xf32>
    %55 = vector.shape_cast %54 : vector<16xf32> to vector<16x1xf32>
    %56 = vector.shape_cast %42 : vector<1x4xf32> to vector<1x4xf32>
    %57 = vector.broadcast %56 : vector<1x4xf32> to vector<16x4xf32>
    %cst_27 = arith.constant 0.000000e+00 : f32
    %58 = vector.broadcast %cst_27 : f32 to vector<16x115xf32>
    %59 = tpu.concatenate %45, %28, %57, %55, %58 in 1 : vector<16x4xf32>, vector<16x4xf32>, vector<16x4xf32>, vector<16x1xf32>, vector<16x115xf32> -> vector<16x128xf32>
    %c0_28 = arith.constant 0 : index
    %c0_29 = arith.constant 0 : index
    %60 = vector.load %arg4[%c0_28, %c0_29] : memref<16x128xf32, #tpu.memory_space<vmem>>, vector<16x128xf32>
    tpu.vector_store %arg4[%c0_28, %c0_29], %59 {strides = array<i32>} : memref<16x128xf32, #tpu.memory_space<vmem>>, vector<16x128xf32>,
    return
  }
  func.func @transform_0(%arg0: i32) -> (i32, i32) {
    %c0_i32 = arith.constant 0 : i32
    %c0_i32_0 = arith.constant 0 : i32
    return %arg0, %c0_i32 : i32, i32
  }
  func.func @transform_1(%arg0: i32) -> (i32, i32) {
    %c0_i32 = arith.constant 0 : i32
    %c0_i32_0 = arith.constant 0 : i32
    %c0_i32_1 = arith.constant 0 : i32
    return %c0_i32, %c0_i32_0 : i32, i32
  }
  func.func @transform_2(%arg0: i32) -> (i32, i32) {
    %c0_i32 = arith.constant 0 : i32
    %c0_i32_0 = arith.constant 0 : i32
    %c0_i32_1 = arith.constant 0 : i32
    return %c0_i32, %c0_i32_0 : i32, i32
  }
  func.func @transform_3(%arg0: i32) -> (i32, i32) {
    %c0_i32 = arith.constant 0 : i32
    %c0_i32_0 = arith.constant 0 : i32
    return %arg0, %c0_i32 : i32, i32
  }
}

</mosaic_0001>

<llo_original>
// kernel: tpu_custom_call.1
$region0: #{tpu_custom_call.1}
  #allocation0 [shape = 'u32[]', space=smem, size = 0x4, offset = 0x4, fixed_abs, tag = 'smem constant byte address 0x4 - core index']
  #allocation1 [shape = 'u32[144,128]{1,0:T(1,128)}', space=vmem, size = 0x12000, scoped, tag = 'internal scratch']
  %s0 = inlined_call_operand.vmem [shape: f32[16,32], index: 0, kind: input, shape index: {}]
  %s1 = inlined_call_operand.vmem [shape: f32[208,64], index: 1, kind: input, shape index: {}]
  %s2 = inlined_call_operand.vmem [shape: f32[8,64], index: 2, kind: input, shape index: {}]
  %s3 = inlined_call_operand.hbm [shape: f32[16,128], index: 3, kind: output, shape index: {}]
  %s4 = sld [smem:[#allocation0]]
  $region22: #{tpu_custom_call.1} parent=0
    _
  %s6 = ssub.s32 1, %s4
  %s7 = scalar_select 0, %s6, %s4
  $region1: #{tpu_custom_call.1} parent=0
    #allocation2 [shape = 'u8[8192]{0}', space=vmem, size = 0x2000, scoped, tag = 'output window, operand 0, single buffered']
    #allocation3 [shape = 's32[1]{0}', space=sflag, size = 0x4, scoped, tag = 'scoped memory for tpu_custom_call.1']
    %8 = vsyncpa [#allocation3], 0
    // Predicated region
    $region2: #{tpu_custom_call.1} parent=1 // pred_check
      _
    $region3: #{tpu_custom_call.1} parent=1 // pred_check_branch
      %10 = sbr.rel (0) target = $region5
    $region4: #{tpu_custom_call.1} parent=1 // pred_region
      _
    $region5: #{tpu_custom_call.1} parent=1 // pred_fallthru
      _
    // Predicated region
    $region6: #{tpu_custom_call.1} parent=1 // pred_check
      _
    $region7: #{tpu_custom_call.1} parent=1 // pred_check_branch
      %12 = sbr.rel (0) target = $region9
    $region8: #{tpu_custom_call.1} parent=1 // pred_region
      _
    $region9: #{tpu_custom_call.1} parent=1 // pred_fallthru
      _
    // Predicated region
    $region10: #{tpu_custom_call.1} parent=1 // pred_check
      _
    $region11: #{tpu_custom_call.1} parent=1 // pred_check_branch
      %14 = sbr.rel (0) target = $region13
    $region12: #{tpu_custom_call.1} parent=1 // pred_region
      _
    $region13: #{tpu_custom_call.1} parent=1 // pred_fallthru
      _
    %v15 = vld [vmem:[%s0] sm:$0xff]
    %v16 = vld [vmem:[%s0 + $0x8] sm:$0xff]
    %v17 = vld [vmem:[%s1] sm:$0xff]
    %v18 = vld [vmem:[%s1 + $0x8] sm:$0xff]
    %v19 = vld [vmem:[%s2] sm:$0x1]
    %v20 = vlaneseq
    %v21 = vshrl.u32 %v20, 7
    %v22 = vsub.s32 0, %v21
    %v23 = vrot.slane %v19, %v22
    %vm24 = vcmask 130048
    %v26 = vsel %vm24, %v15, 0
    %v29 = vsel %vm24, %v16, 0
    %31 = vmatprep.subr.mxu0 0.0
    %32 = vmatpush1.msra.mxu0 %v17
    %33 = vmatprep.subr.mxu0 0.0
    %34 = vmatpush1.msra.mxu0 %v18
    %35 = vmatprep.subr.mxu0 0.0
    %36 = vmatpush1.msra.mxu0 0.0
    %37 = vmatprep.subr.mxu0 0.0
    %38 = vmatpush1.msra.mxu0 0.0
    %39 = vmatprep.subr.mxu0 0.0
    %40 = vmatpush1.msra.mxu0 0.0
    %41 = vmatprep.subr.mxu0 0.0
    %42 = vmatpush1.msra.mxu0 0.0
    %43 = vmatprep.subr.mxu0 0.0
    %44 = vmatpush1.msra.mxu0 0.0
    %45 = vmatprep.subr.mxu0 0.0
    %46 = vmatpush1.msra.mxu0 0.0
    %47 = vmatprep.subr.mxu0 0.0
    %48 = vmatpush1.msra.mxu0 0.0
    %49 = vmatprep.subr.mxu0 0.0
    %50 = vmatpush1.msra.mxu0 0.0
    %51 = vmatprep.subr.mxu0 0.0
    %52 = vmatpush1.msra.mxu0 0.0
    %53 = vmatprep.subr.mxu0 0.0
    %54 = vmatpush1.msra.mxu0 0.0
    %55 = vmatprep.subr.mxu0 0.0
    %56 = vmatpush1.msra.mxu0 0.0
    %57 = vmatprep.subr.mxu0 0.0
    %58 = vmatpush1.msra.mxu0 0.0
    %59 = vmatprep.subr.mxu0 0.0
    %60 = vmatpush1.msra.mxu0 0.0
    %61 = vmatprep.subr.mxu0 0.0
    %62 = vmatpush1.msra.mxu0 0.0
    %63 = vmatprep.subr.mxu0 0.0
    %64 = vmatpush1.msra.mxu0 0.0
    %65 = vmatprep.subr.mxu0 0.0
    %66 = vmatpush1.msra.mxu0 0.0
    %67 = vmatprep.subr.mxu0 0.0
    %68 = vmatpush1.msra.mxu0 0.0
    %69 = vmatprep.subr.mxu0 0.0
    %70 = vmatpush1.msra.mxu0 0.0
    %71 = vmatprep.subr.mxu0 0.0
    %72 = vmatpush1.msra.mxu0 0.0
    %73 = vmatprep.subr.mxu0 0.0
    %74 = vmatpush1.msra.mxu0 0.0
    %75 = vmatprep.subr.mxu0 0.0
    %76 = vmatpush1.msra.mxu0 0.0
    %77 = vmatprep.subr.mxu0 0.0
    %78 = vmatpush1.msra.mxu0 0.0
    %79 = vmatprep.subr.mxu0 0.0
    %80 = vmatpush1.msra.mxu0 0.0
    %81 = vmatprep.subr.mxu0 0.0
    %82 = vmatpush1.msra.mxu0 0.0
    %83 = vmatprep.subr.mxu0 0.0
    %84 = vmatpush1.msra.mxu0 0.0
    %85 = vmatprep.subr.mxu0 0.0
    %86 = vmatpush1.msra.mxu0 0.0
    %87 = vmatprep.subr.mxu0 0.0
    %88 = vmatpush1.msra.mxu0 0.0
    %89 = vmatprep.subr.mxu0 0.0
    %90 = vmatpush1.msra.mxu0 0.0
    %91 = vmatprep.subr.mxu0 0.0
    %92 = vmatpush1.msra.mxu0 0.0
    %93 = vmatprep.subr.mxu0 0.0
    %94 = vmatpush1.msra.mxu0 0.0
    %95 = vmatprep.mubr.f32.mxu0 0.0
    %96 = vmatmul.mubr.f32.gmra.mrb[0].mxu0 %v26
    %v97 = vpop.f32.mrb[0].mxu0
    %v98 = vadd.f32 %v23, %v97
    %v99 = vpop.f32.mrb[0].mxu0
    %100 = vmatprep.mubr.f32.mxu0 0.0
    %101 = vmatmul.mubr.f32.gmra.mrb[0].mxu0 %v29
    %v102 = vpop.f32.mrb[0].mxu0
    %v103 = vadd.f32 %v23, %v102
    %v104 = vpop.f32.mrb[0].mxu0
    %105 = vdwg.mxu0
    %v106 = vmax.f32 %v98, 0.0
    %v107 = vmax.f32 %v103, 0.0
    %v108 = vld [vmem:[%s1 + $0x10] sm:$0xff]
    %v109 = vld [vmem:[%s1 + $0x18] sm:$0xff]
    %v110 = vld [vmem:[%s1 + $0x20] sm:$0xff]
    %v111 = vld [vmem:[%s1 + $0x28] sm:$0xff]
    %v112 = vld [vmem:[%s1 + $0x30] sm:$0xff]
    %v113 = vld [vmem:[%s1 + $0x38] sm:$0xff]
    %v114 = vld [vmem:[%s1 + $0x40] sm:$0xff]
    %v115 = vld [vmem:[%s1 + $0x48] sm:$0xff]
    %v116 = vld [vmem:[%s2 + $0x1] sm:$0x1]
    %v117 = vlaneseq
    %v118 = vshrl.u32 %v117, 7
    %v119 = vsub.s32 0, %v118
    %v120 = vrot.slane %v116, %v119
    %vm121 = vcmask 523264
    %v123 = vsel %vm121, %v106, 0
    %v126 = vsel %vm121, %v107, 0
    %128 = vmatprep.subr.mxu0 0.0
    %129 = vmatpush1.msra.mxu0 %v108
    %130 = vmatprep.subr.mxu0 0.0
    %131 = vmatpush1.msra.mxu0 %v109
    %132 = vmatprep.subr.mxu0 0.0
    %133 = vmatpush1.msra.mxu0 %v110
    %134 = vmatprep.subr.mxu0 0.0
    %135 = vmatpush1.msra.mxu0 %v111
    %136 = vmatprep.subr.mxu0 0.0
    %137 = vmatpush1.msra.mxu0 %v112
    %138 = vmatprep.subr.mxu0 0.0
    %139 = vmatpush1.msra.mxu0 %v113
    %140 = vmatprep.subr.mxu0 0.0
    %141 = vmatpush1.msra.mxu0 %v114
    %142 = vmatprep.subr.mxu0 0.0
    %143 = vmatpush1.msra.mxu0 %v115
    %144 = vmatprep.subr.mxu0 0.0
    %145 = vmatpush1.msra.mxu0 0.0
    %146 = vmatprep.subr.mxu0 0.0
    %147 = vmatpush1.msra.mxu0 0.0
    %148 = vmatprep.subr.mxu0 0.0
    %149 = vmatpush1.msra.mxu0 0.0
    %150 = vmatprep.subr.mxu0 0.0
    %151 = vmatpush1.msra.mxu0 0.0
    %152 = vmatprep.subr.mxu0 0.0
    %153 = vmatpush1.msra.mxu0 0.0
    %154 = vmatprep.subr.mxu0 0.0
    %155 = vmatpush1.msra.mxu0 0.0
    %156 = vmatprep.subr.mxu0 0.0
    %157 = vmatpush1.msra.mxu0 0.0
    %158 = vmatprep.subr.mxu0 0.0
    %159 = vmatpush1.msra.mxu0 0.0
    %160 = vmatprep.subr.mxu0 0.0
    %161 = vmatpush1.msra.mxu0 0.0
    %162 = vmatprep.subr.mxu0 0.0
    %163 = vmatpush1.msra.mxu0 0.0
    %164 = vmatprep.subr.mxu0 0.0
    %165 = vmatpush1.msra.mxu0 0.0
    %166 = vmatprep.subr.mxu0 0.0
    %167 = vmatpush1.msra.mxu0 0.0
    %168 = vmatprep.subr.mxu0 0.0
    %169 = vmatpush1.msra.mxu0 0.0
    %170 = vmatprep.subr.mxu0 0.0
    %171 = vmatpush1.msra.mxu0 0.0
    %172 = vmatprep.subr.mxu0 0.0
    %173 = vmatpush1.msra.mxu0 0.0
    %174 = vmatprep.subr.mxu0 0.0
    %175 = vmatpush1.msra.mxu0 0.0
    %176 = vmatprep.subr.mxu0 0.0
    %177 = vmatpush1.msra.mxu0 0.0
    %178 = vmatprep.subr.mxu0 0.0
    %179 = vmatpush1.msra.mxu0 0.0
    %180 = vmatprep.subr.mxu0 0.0
    %181 = vmatpush1.msra.mxu0 0.0
    %182 = vmatprep.subr.mxu0 0.0
    %183 = vmatpush1.msra.mxu0 0.0
    %184 = vmatprep.subr.mxu0 0.0
    %185 = vmatpush1.msra.mxu0 0.0
    %186 = vmatprep.subr.mxu0 0.0
    %187 = vmatpush1.msra.mxu0 0.0
    %188 = vmatprep.subr.mxu0 0.0
    %189 = vmatpush1.msra.mxu0 0.0
    %190 = vmatprep.subr.mxu0 0.0
    %191 = vmatpush1.msra.mxu0 0.0
    %192 = vmatprep.mubr.f32.mxu0 0.0
    %193 = vmatmul.mubr.f32.gmra.mrb[0].mxu0 %v123
    %v194 = vpop.f32.mrb[0].mxu0
    %v195 = vadd.f32 %v120, %v194
    %v196 = vpop.f32.mrb[0].mxu0
    %197 = vmatprep.mubr.f32.mxu0 0.0
    %198 = vmatmul.mubr.f32.gmra.mrb[0].mxu0 %v126
    %v199 = vpop.f32.mrb[0].mxu0
    %v200 = vadd.f32 %v120, %v199
    %v201 = vpop.f32.mrb[0].mxu0
    %202 = vdwg.mxu0
    %v203 = vmax.f32 %v195, 0.0
    %v204 = vmax.f32 %v200, 0.0
    %v205 = vld [vmem:[%s1 + $0x50] sm:$0xff]
    %v206 = vld [vmem:[%s1 + $0x58] sm:$0xff]
    %v207 = vld [vmem:[%s1 + $0x60] sm:$0xff]
    %v208 = vld [vmem:[%s1 + $0x68] sm:$0xff]
    %v209 = vld [vmem:[%s1 + $0x70] sm:$0xff]
    %v210 = vld [vmem:[%s1 + $0x78] sm:$0xff]
    %v211 = vld [vmem:[%s1 + $0x80] sm:$0xff]
    %v212 = vld [vmem:[%s1 + $0x88] sm:$0xff]
    %v213 = vld [vmem:[%s2 + $0x2] sm:$0x1]
    %v214 = vlaneseq
    %v215 = vshrl.u32 %v214, 7
    %v216 = vsub.s32 0, %v215
    %v217 = vrot.slane %v213, %v216
    %v219 = vsel %vm121, %v203, 0
    %v222 = vsel %vm121, %v204, 0
    %224 = vmatprep.subr.mxu0 0.0
    %225 = vmatpush1.msra.mxu0 %v205
    %226 = vmatprep.subr.mxu0 0.0
    %227 = vmatpush1.msra.mxu0 %v206
    %228 = vmatprep.subr.mxu0 0.0
    %229 = vmatpush1.msra.mxu0 %v207
    %230 = vmatprep.subr.mxu0 0.0
    %231 = vmatpush1.msra.mxu0 %v208
    %232 = vmatprep.subr.mxu0 0.0
    %233 = vmatpush1.msra.mxu0 %v209
    %234 = vmatprep.subr.mxu0 0.0
    %235 = vmatpush1.msra.mxu0 %v210
    %236 = vmatprep.subr.mxu0 0.0
    %237 = vmatpush1.msra.mxu0 %v211
    %238 = vmatprep.subr.mxu0 0.0
    %239 = vmatpush1.msra.mxu0 %v212
    %240 = vmatprep.subr.mxu0 0.0
    %241 = vmatpush1.msra.mxu0 0.0
    %242 = vmatprep.subr.mxu0 0.0
    %243 = vmatpush1.msra.mxu0 0.0
    %244 = vmatprep.subr.mxu0 0.0
    %245 = vmatpush1.msra.mxu0 0.0
    %246 = vmatprep.subr.mxu0 0.0
    %247 = vmatpush1.msra.mxu0 0.0
    %248 = vmatprep.subr.mxu0 0.0
    %249 = vmatpush1.msra.mxu0 0.0
    %250 = vmatprep.subr.mxu0 0.0
    %251 = vmatpush1.msra.mxu0 0.0
    %252 = vmatprep.subr.mxu0 0.0
    %253 = vmatpush1.msra.mxu0 0.0
    %254 = vmatprep.subr.mxu0 0.0
    %255 = vmatpush1.msra.mxu0 0.0
    %256 = vmatprep.subr.mxu0 0.0
    %257 = vmatpush1.msra.mxu0 0.0
    %258 = vmatprep.subr.mxu0 0.0
    %259 = vmatpush1.msra.mxu0 0.0
    %260 = vmatprep.subr.mxu0 0.0
    %261 = vmatpush1.msra.mxu0 0.0
    %262 = vmatprep.subr.mxu0 0.0
    %263 = vmatpush1.msra.mxu0 0.0
    %264 = vmatprep.subr.mxu0 0.0
    %265 = vmatpush1.msra.mxu0 0.0
    %266 = vmatprep.subr.mxu0 0.0
    %267 = vmatpush1.msra.mxu0 0.0
    %268 = vmatprep.subr.mxu0 0.0
    %269 = vmatpush1.msra.mxu0 0.0
    %270 = vmatprep.subr.mxu0 0.0
    %271 = vmatpush1.msra.mxu0 0.0
    %272 = vmatprep.subr.mxu0 0.0
    %273 = vmatpush1.msra.mxu0 0.0
    %274 = vmatprep.subr.mxu0 0.0
    %275 = vmatpush1.msra.mxu0 0.0
    %276 = vmatprep.subr.mxu0 0.0
    %277 = vmatpush1.msra.mxu0 0.0
    %278 = vmatprep.subr.mxu0 0.0
    %279 = vmatpush1.msra.mxu0 0.0
    %280 = vmatprep.subr.mxu0 0.0
    %281 = vmatpush1.msra.mxu0 0.0
    %282 = vmatprep.subr.mxu0 0.0
    %283 = vmatpush1.msra.mxu0 0.0
    %284 = vmatprep.subr.mxu0 0.0
    %285 = vmatpush1.msra.mxu0 0.0
    %286 = vmatprep.subr.mxu0 0.0
    %287 = vmatpush1.msra.mxu0 0.0
    %288 = vmatprep.mubr.f32.mxu0 0.0
    %289 = vmatmul.mubr.f32.gmra.mrb[0].mxu0 %v219
    %v290 = vpop.f32.mrb[0].mxu0
    %v291 = vadd.f32 %v217, %v290
    %v292 = vpop.f32.mrb[0].mxu0
    %293 = vmatprep.mubr.f32.mxu0 0.0
    %294 = vmatmul.mubr.f32.gmra.mrb[0].mxu0 %v222
    %v295 = vpop.f32.mrb[0].mxu0
    %v296 = vadd.f32 %v217, %v295
    %v297 = vpop.f32.mrb[0].mxu0
    %298 = vdwg.mxu0
    %v299 = vmax.f32 %v291, 0.0
    %v300 = vmax.f32 %v296, 0.0
    %v301 = vld [vmem:[%s1 + $0x90] sm:$0xff]
    %v302 = vld [vmem:[%s1 + $0x98] sm:$0xff]
    %v303 = vld [vmem:[%s1 + $0xa0] sm:$0xff]
    %v304 = vld [vmem:[%s1 + $0xa8] sm:$0xff]
    %v305 = vld [vmem:[%s1 + $0xb0] sm:$0xff]
    %v306 = vld [vmem:[%s1 + $0xb8] sm:$0xff]
    %v307 = vld [vmem:[%s1 + $0xc0] sm:$0xff]
    %v308 = vld [vmem:[%s1 + $0xc8] sm:$0xff]
    %v309 = vld [vmem:[%s2 + $0x3] sm:$0x1]
    %v310 = vlaneseq
    %v311 = vshrl.u32 %v310, 7
    %v312 = vsub.s32 0, %v311
    %v313 = vrot.slane %v309, %v312
    %v315 = vsel %vm121, %v299, 0
    %v318 = vsel %vm121, %v300, 0
    %320 = vmatprep.subr.mxu0 0.0
    %321 = vmatpush1.msra.mxu0 %v301
    %322 = vmatprep.subr.mxu0 0.0
    %323 = vmatpush1.msra.mxu0 %v302
    %324 = vmatprep.subr.mxu0 0.0
    %325 = vmatpush1.msra.mxu0 %v303
    %326 = vmatprep.subr.mxu0 0.0
    %327 = vmatpush1.msra.mxu0 %v304
    %328 = vmatprep.subr.mxu0 0.0
    %329 = vmatpush1.msra.mxu0 %v305
    %330 = vmatprep.subr.mxu0 0.0
    %331 = vmatpush1.msra.mxu0 %v306
    %332 = vmatprep.subr.mxu0 0.0
    %333 = vmatpush1.msra.mxu0 %v307
    %334 = vmatprep.subr.mxu0 0.0
    %335 = vmatpush1.msra.mxu0 %v308
    %336 = vmatprep.subr.mxu0 0.0
    %337 = vmatpush1.msra.mxu0 0.0
    %338 = vmatprep.subr.mxu0 0.0
    %339 = vmatpush1.msra.mxu0 0.0
    %340 = vmatprep.subr.mxu0 0.0
    %341 = vmatpush1.msra.mxu0 0.0
    %342 = vmatprep.subr.mxu0 0.0
    %343 = vmatpush1.msra.mxu0 0.0
    %344 = vmatprep.subr.mxu0 0.0
    %345 = vmatpush1.msra.mxu0 0.0
    %346 = vmatprep.subr.mxu0 0.0
    %347 = vmatpush1.msra.mxu0 0.0
    %348 = vmatprep.subr.mxu0 0.0
    %349 = vmatpush1.msra.mxu0 0.0
    %350 = vmatprep.subr.mxu0 0.0
    %351 = vmatpush1.msra.mxu0 0.0
    %352 = vmatprep.subr.mxu0 0.0
    %353 = vmatpush1.msra.mxu0 0.0
    %354 = vmatprep.subr.mxu0 0.0
    %355 = vmatpush1.msra.mxu0 0.0
    %356 = vmatprep.subr.mxu0 0.0
    %357 = vmatpush1.msra.mxu0 0.0
    %358 = vmatprep.subr.mxu0 0.0
    %359 = vmatpush1.msra.mxu0 0.0
    %360 = vmatprep.subr.mxu0 0.0
    %361 = vmatpush1.msra.mxu0 0.0
    %362 = vmatprep.subr.mxu0 0.0
    %363 = vmatpush1.msra.mxu0 0.0
    %364 = vmatprep.subr.mxu0 0.0
    %365 = vmatpush1.msra.mxu0 0.0
    %366 = vmatprep.subr.mxu0 0.0
    %367 = vmatpush1.msra.mxu0 0.0
    %368 = vmatprep.subr.mxu0 0.0
    %369 = vmatpush1.msra.mxu0 0.0
    %370 = vmatprep.subr.mxu0 0.0
    %371 = vmatpush1.msra.mxu0 0.0
    %372 = vmatprep.subr.mxu0 0.0
    %373 = vmatpush1.msra.mxu0 0.0
    %374 = vmatprep.subr.mxu0 0.0
    %375 = vmatpush1.msra.mxu0 0.0
    %376 = vmatprep.subr.mxu0 0.0
    %377 = vmatpush1.msra.mxu0 0.0
    %378 = vmatprep.subr.mxu0 0.0
    %379 = vmatpush1.msra.mxu0 0.0
    %380 = vmatprep.subr.mxu0 0.0
    %381 = vmatpush1.msra.mxu0 0.0
    %382 = vmatprep.subr.mxu0 0.0
    %383 = vmatpush1.msra.mxu0 0.0
    %384 = vmatprep.mubr.f32.mxu0 0.0
    %385 = vmatmul.mubr.f32.gmra.mrb[0].mxu0 %v315
    %v386 = vpop.f32.mrb[0].mxu0
    %v387 = vadd.f32 %v313, %v386
    %v388 = vpop.f32.mrb[0].mxu0
    %389 = vmatprep.mubr.f32.mxu0 0.0
    %390 = vmatmul.mubr.f32.gmra.mrb[0].mxu0 %v318
    %v391 = vpop.f32.mrb[0].mxu0
    %v392 = vadd.f32 %v313, %v391
    %v393 = vpop.f32.mrb[0].mxu0
    %394 = vdwg.mxu0
    %v395 = vld [vmem:[%s2 + $0x4] sm:$0x1]
    %v396 = vmax.f32 %v395, 0.0
    %v397 = vand.u32 2147483647, %v395
    %v398 = vsub.f32 0.0, %v397
    %v399 = vmul.f32 %v398, 1.442695
    %v400 = vpow.pop %v399
    %v401 = vadd.f32 %v400, 1.0
    %v402 = vlog2.pop %v401
    %v403 = vmul.f32 %v402, 0.6931472
    %v404 = vmul.f32 -0.5, %v400
    %v405 = vadd.f32 %v404, 1.0
    %v406 = vmul.f32 %v405, %v400
    %v407 = vand.u32 2147483647, %v400
    %vm408 = vcmp.lt.f32.partialorder %v407, 0.0004427343
    %v409 = vsel %vm408, %v406, %v403
    %v410 = vadd.f32 %v396, %v409
    %v411 = vmax.f32 %v410, -1.0
    %v412 = vmin.f32 %v411, 1.0
    %v413 = vlaneseq
    %v414 = vshrl.u32 %v413, 7
    %v415 = vsub.s32 0, %v414
    %v416 = vrot.slane %v412, %v415
    %417 = vrot.lane.b32.xlu0 %v15, 112
    %v418 = vpop.permute.xlu0 %417
    %419 = vrot.lane.b32.xlu0 %v16, 112
    %v420 = vpop.permute.xlu0 %419
    %v423 = vmul.f32 %v416, %v418
    %v424 = vmul.f32 %v416, %v420
    %v425 = vadd.f32 %v387, %v423
    %v426 = vadd.f32 %v392, %v424
    %v427 = vmul.f32 %v15, %v15
    %v428 = vmul.f32 %v16, %v16
    %v429 = vmul.f32 %v427, -0.5
    %v430 = vmul.f32 %v428, -0.5
    %v431 = vlog2.pop %v412
    %v432 = vmul.f32 %v431, 0.6931472
    %v433 = vlaneseq
    %v434 = vshrl.u32 %v433, 7
    %v435 = vsub.s32 0, %v434
    %v436 = vrot.slane %v432, %v435
    %438 = vrot.lane.b32.xlu0 %v436, 16
    %v439 = vpop.permute.xlu0 %438
    %v441 = vsub.f32 %v429, %v439
    %v442 = vsub.f32 %v430, %v439
    %v443 = vsub.f32 %v441, 0.9189385
    %v444 = vsub.f32 %v442, 0.9189385
    %447 = vrot.lane.b32.xlu0 %v443, 112
    %v448 = vpop.permute.xlu0 %447
    %449 = vrot.lane.b32.xlu0 %v444, 112
    %v450 = vpop.permute.xlu0 %449
    %vm453 = vcmask 31744
    %v454 = vsel %vm453, %v448, 0.0
    %455 = vadd.xlane.f32.xlu0 %v454
    %v456 = vpop.xlane.xlu0 %455
    %v457 = vsel %vm453, %v450, 0.0
    %458 = vadd.xlane.f32.xlu0 %v457
    %v459 = vpop.xlane.xlu0 %458
    %462 = vrot.lane.b32.xlu0 %v387, 4
    %v463 = vpop.permute.xlu0 %462
    %464 = vrot.lane.b32.xlu0 %v392, 4
    %v465 = vpop.permute.xlu0 %464
    %469 = vrot.lane.b32.xlu0 %v416, 8
    %v470 = vpop.permute.xlu0 %469
    %v472 = vsel %vm453, %v425, %v463
    %v473 = vsel %vm453, %v426, %v465
    %vm474 = vcmask 64512
    %v475 = vsel %vm474, %v472, %v470
    %v476 = vsel %vm474, %v473, %v470
    %vm477 = vcmask 97280
    %v478 = vsel %vm477, %v475, %v456
    %v479 = vsel %vm477, %v476, %v459
    %vm480 = vcmask 105472
    %v481 = vsel %vm480, %v478, 0.0
    %v482 = vsel %vm480, %v479, 0.0
    %483 = vst [vmem:[#allocation2] sm:$0xff] %v481
    %484 = vst [vmem:[#allocation2 + $0x8] sm:$0xff] %v482
    // Predicated region
    $region14: #{tpu_custom_call.1} parent=1 // pred_check
      _
    $region15: #{tpu_custom_call.1} parent=1 // pred_check_branch
      %486 = sbr.rel (0) target = $region17
    $region16: #{tpu_custom_call.1} parent=1 // pred_region
      %s488 = ssub.s32 256, 256
      %489 = vsyncadd [#allocation3], %s488
      %s490 = sshll.u32 [#allocation2], 4
      %s491 = int_to_ptr.vmem [resolvable:$true] %s490
      %496 = dma.vmem_to_hbm [thread:$0]  %s491, 256, %s3, [#allocation3], 128, 128, 8
    $region17: #{tpu_custom_call.1} parent=1 // pred_fallthru
      _
    // Predicated region
    $region18: #{tpu_custom_call.1} parent=1 // pred_check
      _
    $region19: #{tpu_custom_call.1} parent=1 // pred_check_branch
      %498 = sbr.rel (0) target = $region21
    $region20: #{tpu_custom_call.1} parent=1 // pred_region
      %499 = dma.done [#allocation3], 256
    $region21: #{tpu_custom_call.1} parent=1 // pred_fallthru
      _
    %500 = vsyncpa [#allocation3], 1

</llo_original>
